<compile_context>
chip_gen: v7x
topology: tpu7x:2x2x1
jax: 0.10.0
libtpu: 0.0.40
codegen_flags: <defaults>
</compile_context>

<pallas_src>
import jax
import jax.numpy as jnp
from jax import lax
from jax.experimental import pallas as pl
from jax.experimental.pallas import tpu as pltpu


def _round_up(a: int, m: int) -> int:
    return (a + m - 1) // m * m


def _linear_kernel(x_ref, w_ref, b_ref, o_ref, acc_ref):
    # x_ref:  [tm, tk]  bf16   (flattened-input row tile)
    # w_ref:  [Np, tk]  bf16   (weight tile, PyTorch [N, D] layout, N padded)
    # b_ref:  [1,  Np]  f32    (bias, N padded)
    # o_ref:  [tm, Np]  f32    (logits tile, lane-dense)
    # acc_ref:[tm, Np]  f32    (VMEM scratch accumulator)
    k = pl.program_id(1)

    @pl.when(k == 0)
    def _():
        acc_ref[...] = jnp.zeros_like(acc_ref)

    # Contract the K tile on the MXU: [tm, tk] x [Np, tk]^T -> [tm, Np], f32 acc.
    acc_ref[...] += lax.dot_general(
        x_ref[...], w_ref[...],
        dimension_numbers=(((1,), (1,)), ((), ())),
        preferred_element_type=jnp.float32,
    )

    @pl.when(k == pl.num_programs(1) - 1)
    def _():
        # Epilogue (bias add) in f32 vregs.
        o_ref[...] = acc_ref[...] + b_ref[...]


def softmax_regression_forward(x, weight, bias):
    """Forward pass of SoftmaxRegression.

    x:      [B, C, H, W] (or any [B, ...]) float32
    weight: [N, D] float32  (PyTorch nn.Linear layout, D = prod of non-batch dims)
    bias:   [N]    float32
    returns [B, N] float32 logits (the module applies no softmax in forward()).
    """
    B = x.shape[0]
    x_flat = x.reshape(B, -1)                      # nn.Flatten (glue)
    D = x_flat.shape[1]
    N = weight.shape[0]

    # ---- padded / tiled geometry -------------------------------------------
    # Lane-dense output width.
    Np = _round_up(N, 128)
    # Row tile: pad tiny batches to one 8-row sublane tile; tile big batches.
    tm = 256 if B > 256 else _round_up(B, 8)
    Bp = _round_up(B, tm)
    # Contraction tile: 256-aligned (MXU-friendly on v6e/v7x, fine on v5e),
    # capped so bf16 x/w tiles + f32 accumulator stay far inside v7x VMEM.
    tk = min(_round_up(D, 256), 2048)
    Dp = _round_up(D, tk)

    # ---- glue: cast + zero-pad operands ------------------------------------
    x_p = jnp.pad(x_flat.astype(jnp.bfloat16), ((0, Bp - B), (0, Dp - D)))
    w_p = jnp.pad(weight.astype(jnp.bfloat16), ((0, Np - N), (0, Dp - D)))
    b_p = jnp.pad(bias.astype(jnp.float32).reshape(1, N), ((0, 0), (0, Np - N)))

    grid = (Bp // tm, Dp // tk)

    out_padded = pl.pallas_call(
        _linear_kernel,
        out_shape=jax.ShapeDtypeStruct((Bp, Np), jnp.float32),
        grid_spec=pltpu.PrefetchScalarGridSpec(
            num_scalar_prefetch=0,
            grid=grid,
            in_specs=[
                pl.BlockSpec((tm, tk), lambda i, k: (i, k)),   # x rows / K tile
                pl.BlockSpec((Np, tk), lambda i, k: (0, k)),   # weight K tile
                pl.BlockSpec((1, Np), lambda i, k: (0, 0)),    # bias (resident)
            ],
            out_specs=pl.BlockSpec((tm, Np), lambda i, k: (i, 0)),
            scratch_shapes=[pltpu.VMEM((tm, Np), jnp.float32)],
        ),
        compiler_params=pltpu.CompilerParams(
            # batch tiles independent -> parallel (megacore on v7x);
            # reduction axis last -> arbitrary.
            dimension_semantics=("parallel", "arbitrary"),
        ),
    )(x_p, w_p, b_p)

    return out_padded[:B, :N]


if __name__ == "__main__":
    # Small shapes consistent with the module: batch=2, channels=4, spatial=16.
    B, C, H, W = 2, 4, 16, 16
    num_outputs = 10
    D = C * H * W

    key = jax.random.PRNGKey(0)
    kx, kw, kb = jax.random.split(key, 3)

    x = jax.random.normal(kx, (B, C, H, W), dtype=jnp.float32)

    # Deterministic parameter init (PyTorch nn.Linear default: U(-1/sqrt(D), 1/sqrt(D))).
    bound = 1.0 / jnp.sqrt(jnp.float32(D))
    weight = jax.random.uniform(kw, (num_outputs, D), jnp.float32, -bound, bound)
    bias = jax.random.uniform(kb, (num_outputs,), jnp.float32, -bound, bound)

    out = softmax_regression_forward(x, weight, bias)
    out = jax.block_until_ready(out)

    # Cross-check against plain-JAX references.
    assert out.shape == (B, num_outputs)
    # bf16-matmul reference (same numerics as the kernel's MXU path).
    ref_bf16 = (
        jnp.dot(x.reshape(B, -1).astype(jnp.bfloat16),
                weight.T.astype(jnp.bfloat16),
                preferred_element_type=jnp.float32)
        + bias.astype(jnp.float32)
    )
    assert jnp.allclose(out, ref_bf16, atol=1e-2, rtol=1e-2)
    # f32 reference (looser tolerance: kernel feeds bf16 operands to the MXU).
    ref_f32 = x.reshape(B, -1) @ weight.T + bias
    assert jnp.allclose(out, ref_f32, atol=5e-2, rtol=5e-2)

    print("KERNEL_OK")
</pallas_src>

<mosaic_0001>
module attributes {stable_mosaic.version = 11 : i64} {
  func.func @_linear_kernel(%arg0: i32, %arg1: i32, %arg2: memref<8x1024xbf16, #tpu.memory_space<vmem>>, %arg3: memref<128x1024xbf16, #tpu.memory_space<vmem>>, %arg4: memref<1x128xf32, #tpu.memory_space<vmem>>, %arg5: memref<8x128xf32, #tpu.memory_space<vmem>>, %arg6: memref<8x128xf32, #tpu.memory_space<vmem>>) attributes {dimension_semantics = [#tpu.dimension_semantics<parallel>, #tpu.dimension_semantics<arbitrary>], iteration_bounds = array<i64: 1, 1>, scalar_prefetch = 0 : i64, scratch_operands = 1 : i64, tpu.core_type = #tpu.core_type<tc>, window_params = [{transform_indices = @transform_0, window_bounds = array<i64: 8, 1024>}, {transform_indices = @transform_1, window_bounds = array<i64: 128, 1024>}, {pipeline_mode = #tpu.pipeline_mode<synchronous>, transform_indices = @transform_2, window_bounds = array<i64: 1, 128>}, {transform_indices = @transform_3, window_bounds = array<i64: 8, 128>}]} {
    %c0_i32 = arith.constant 0 : i32
    %0 = arith.cmpi eq, %arg1, %c0_i32 : i32
    %1 = arith.extui %0 : i1 to i32
    %c0_i32_0 = arith.constant 0 : i32
    %2 = arith.cmpi ne, %1, %c0_i32_0 : i32
    scf.if %2 {
      %cst_10 = arith.constant 0.000000e+00 : f32
      %12 = vector.broadcast %cst_10 : f32 to vector<8x128xf32>
      %c0_11 = arith.constant 0 : index
      %c0_12 = arith.constant 0 : index
      %13 = vector.load %arg6[%c0_11, %c0_12] : memref<8x128xf32, #tpu.memory_space<vmem>>, vector<8x128xf32>
      tpu.vector_store %arg6[%c0_11, %c0_12], %12 {strides = array<i32>} : memref<8x128xf32, #tpu.memory_space<vmem>>, vector<8x128xf32>,
    } else {
    }
    %c0 = arith.constant 0 : index
    %c0_1 = arith.constant 0 : index
    %3 = vector.load %arg6[%c0, %c0_1] : memref<8x128xf32, #tpu.memory_space<vmem>>, vector<8x128xf32>
    %c0_2 = arith.constant 0 : index
    %c0_3 = arith.constant 0 : index
    %4 = vector.load %arg2[%c0_2, %c0_3] : memref<8x1024xbf16, #tpu.memory_space<vmem>>, vector<8x1024xbf16>
    %c0_4 = arith.constant 0 : index
    %c0_5 = arith.constant 0 : index
    %5 = vector.load %arg3[%c0_4, %c0_5] : memref<128x1024xbf16, #tpu.memory_space<vmem>>, vector<128x1024xbf16>
    %cst = arith.constant dense<0.000000e+00> : vector<8x128xf32>
    %6 = tpu.matmul %4, %5, %cst {dimension_numbers = #tpu.dot_dimension_numbers<[1], [1], [0], [0], [0, 0, 1, 0], [], []>} : vector<8x1024xbf16>, vector<128x1024xbf16>, vector<8x128xf32> -> vector<8x128xf32>
    %7 = arith.addf %3, %6 : vector<8x128xf32>
    %c0_6 = arith.constant 0 : index
    %c0_7 = arith.constant 0 : index
    %8 = vector.load %arg6[%c0_6, %c0_7] : memref<8x128xf32, #tpu.memory_space<vmem>>, vector<8x128xf32>
    tpu.vector_store %arg6[%c0_6, %c0_7], %7 {strides = array<i32>} : memref<8x128xf32, #tpu.memory_space<vmem>>, vector<8x128xf32>,
    %c0_i32_8 = arith.constant 0 : i32
    %9 = arith.cmpi eq, %arg1, %c0_i32_8 : i32
    %10 = arith.extui %9 : i1 to i32
    %c0_i32_9 = arith.constant 0 : i32
    %11 = arith.cmpi ne, %10, %c0_i32_9 : i32
    scf.if %11 {
      %c0_10 = arith.constant 0 : index
      %c0_11 = arith.constant 0 : index
      %12 = vector.load %arg6[%c0_10, %c0_11] : memref<8x128xf32, #tpu.memory_space<vmem>>, vector<8x128xf32>
      %c0_12 = arith.constant 0 : index
      %c0_13 = arith.constant 0 : index
      %13 = vector.load %arg4[%c0_12, %c0_13] : memref<1x128xf32, #tpu.memory_space<vmem>>, vector<1x128xf32>
      %14 = vector.broadcast %13 : vector<1x128xf32> to vector<8x128xf32>
      %15 = arith.addf %12, %14 : vector<8x128xf32>
      %c0_14 = arith.constant 0 : index
      %c0_15 = arith.constant 0 : index
      %16 = vector.load %arg5[%c0_14, %c0_15] : memref<8x128xf32, #tpu.memory_space<vmem>>, vector<8x128xf32>
      tpu.vector_store %arg5[%c0_14, %c0_15], %15 {strides = array<i32>} : memref<8x128xf32, #tpu.memory_space<vmem>>, vector<8x128xf32>,
    } else {
    }
    return
  }
  func.func @transform_0(%arg0: i32, %arg1: i32) -> (i32, i32) {
    %c0_i32 = arith.constant 0 : i32
    return %arg0, %arg1 : i32, i32
  }
  func.func @transform_1(%arg0: i32, %arg1: i32) -> (i32, i32) {
    %c0_i32 = arith.constant 0 : i32
    %c0_i32_0 = arith.constant 0 : i32
    return %c0_i32, %arg1 : i32, i32
  }
  func.func @transform_2(%arg0: i32, %arg1: i32) -> (i32, i32) {
    %c0_i32 = arith.constant 0 : i32
    %c0_i32_0 = arith.constant 0 : i32
    %c0_i32_1 = arith.constant 0 : i32
    return %c0_i32, %c0_i32_0 : i32, i32
  }
  func.func @transform_3(%arg0: i32, %arg1: i32) -> (i32, i32) {
    %c0_i32 = arith.constant 0 : i32
    %c0_i32_0 = arith.constant 0 : i32
    return %arg0, %c0_i32 : i32, i32
  }
}

</mosaic_0001>

<llo_original>
// kernel: tpu_custom_call.1
$region0: #{tpu_custom_call.1}
  #allocation0 [shape = 'u32[]', space=smem, size = 0x4, offset = 0x4, fixed_abs, tag = 'smem constant byte address 0x4 - core index']
  #allocation1 [shape = 'u32[144,128]{1,0:T(1,128)}', space=vmem, size = 0x12000, scoped, tag = 'internal scratch']
  #allocation2 [shape = 'f32[8,128]{1,0:T(8,128)}', space=vmem, size = 0x1000, scoped, tag = 'scratch operand']
  %s0 = inlined_call_operand.hbm [shape: bf16[8,1024], index: 0, kind: input, shape index: {}]
  %s1 = inlined_call_operand.hbm [shape: bf16[128,1024], index: 1, kind: input, shape index: {}]
  %s2 = inlined_call_operand.vmem [shape: f32[1,128], index: 2, kind: input, shape index: {}]
  %s3 = inlined_call_operand.hbm [shape: f32[8,128], index: 3, kind: output, shape index: {}]
  %s4 = sld [smem:[#allocation0]]
  $region38: #{tpu_custom_call.1} parent=0
    _
  %s6 = ssub.s32 1, %s4
  %s7 = scalar_select 0, %s6, %s4
  $region1: #{tpu_custom_call.1} parent=0
    #allocation3 [shape = 'u8[16384]{0}', space=vmem, size = 0x4000, scoped, tag = 'input window, operand 0, single buffered']
    #allocation4 [shape = 's32[1]{0}', space=sflag, size = 0x4, scoped, tag = 'scoped memory for tpu_custom_call.1']
    #allocation5 [shape = 's32[1]{0}', space=sflag, size = 0x4, scoped, tag = 'scoped memory for tpu_custom_call.1']
    #allocation6 [shape = 'u8[262144]{0}', space=vmem, size = 0x40000, scoped, tag = 'input window, operand 1, single buffered']
    #allocation7 [shape = 's32[1]{0}', space=sflag, size = 0x4, scoped, tag = 'scoped memory for tpu_custom_call.1']
    #allocation8 [shape = 'u8[4096]{0}', space=vmem, size = 0x1000, scoped, tag = 'output window, operand 0, single buffered']
    %8 = vsyncpa [#allocation4], 0
    %9 = vsyncpa [#allocation7], 0
    %10 = vsyncpa [#allocation5], 0
    // Predicated region
    $region2: #{tpu_custom_call.1} parent=1 // pred_check
      _
    $region3: #{tpu_custom_call.1} parent=1 // pred_check_branch
      %12 = sbr.rel (0) target = $region5
    $region4: #{tpu_custom_call.1} parent=1 // pred_region
      %s14 = ssub.s32 512, 512
      %15 = vsyncadd [#allocation4], %s14
      %s17 = sshll.u32 [#allocation3], 4
      %s18 = int_to_ptr.vmem [resolvable:$true] %s17
      %20 = dma.hbm_to_vmem [thread:$0]  %s0, 512, %s18, [#allocation4]
    $region5: #{tpu_custom_call.1} parent=1 // pred_fallthru
      _
    // Predicated region
    $region6: #{tpu_custom_call.1} parent=1 // pred_check
      _
    $region7: #{tpu_custom_call.1} parent=1 // pred_check_branch
      %22 = sbr.rel (0) target = $region9
    $region8: #{tpu_custom_call.1} parent=1 // pred_region
      %s24 = ssub.s32 8192, 8192
      %25 = vsyncadd [#allocation7], %s24
      %s26 = sshll.u32 [#allocation6], 4
      %s27 = int_to_ptr.vmem [resolvable:$true] %s26
      %32 = dma.hbm_to_vmem [thread:$0]  %s1, 8192, %s27, [#allocation7], 512, 512, 32
    $region9: #{tpu_custom_call.1} parent=1 // pred_fallthru
      _
    // Predicated region
    $region10: #{tpu_custom_call.1} parent=1 // pred_check
      _
    $region11: #{tpu_custom_call.1} parent=1 // pred_check_branch
      %34 = sbr.rel (0) target = $region13
    $region12: #{tpu_custom_call.1} parent=1 // pred_region
      _
    $region13: #{tpu_custom_call.1} parent=1 // pred_fallthru
      _
    // Predicated region
    $region14: #{tpu_custom_call.1} parent=1 // pred_check
      _
    $region15: #{tpu_custom_call.1} parent=1 // pred_check_branch
      %36 = sbr.rel (0) target = $region17
    $region16: #{tpu_custom_call.1} parent=1 // pred_region
      %37 = dma.done [#allocation4], 512
    $region17: #{tpu_custom_call.1} parent=1 // pred_fallthru
      _
    // Predicated region
    $region18: #{tpu_custom_call.1} parent=1 // pred_check
      _
    $region19: #{tpu_custom_call.1} parent=1 // pred_check_branch
      %39 = sbr.rel (0) target = $region21
    $region20: #{tpu_custom_call.1} parent=1 // pred_region
      %40 = dma.done [#allocation7], 8192
    $region21: #{tpu_custom_call.1} parent=1 // pred_fallthru
      _
    %p42 = scmp.eq.s32.totalorder 0, 0
    // Predicated region
    $region22: #{tpu_custom_call.1} parent=1 // pred_check
      %p43 = pneg %p42
    $region23: #{tpu_custom_call.1} parent=1 // pred_check_branch
      %45 = sbr.rel (%p43) target = $region25
    $region24: #{tpu_custom_call.1} parent=1 // pred_region
      %46 = vst [vmem:[#allocation2] sm:$0xff] 0.0
    $region25: #{tpu_custom_call.1} parent=1 // pred_fallthru
      _
    %v47 = vld [vmem:[#allocation2] sm:$0xff]
    %v48 = vld [vmem:[#allocation3] sm:$0xff]
    %v49 = vld [vmem:[#allocation3 + $0x8] sm:$0xff]
    %v50 = vld [vmem:[#allocation3 + $0x10] sm:$0xff]
    %v51 = vld [vmem:[#allocation3 + $0x18] sm:$0xff]
    %v52 = vld [vmem:[#allocation6] sm:$0xff]
    %v53 = vld [vmem:[#allocation6 + $0x8] sm:$0xff]
    %v54 = vld [vmem:[#allocation6 + $0x10] sm:$0xff]
    %v55 = vld [vmem:[#allocation6 + $0x18] sm:$0xff]
    %v56 = vld [vmem:[#allocation6 + $0x20] sm:$0xff]
    %v57 = vld [vmem:[#allocation6 + $0x28] sm:$0xff]
    %v58 = vld [vmem:[#allocation6 + $0x30] sm:$0xff]
    %v59 = vld [vmem:[#allocation6 + $0x38] sm:$0xff]
    %v60 = vld [vmem:[#allocation6 + $0x40] sm:$0xff]
    %v61 = vld [vmem:[#allocation6 + $0x48] sm:$0xff]
    %v62 = vld [vmem:[#allocation6 + $0x50] sm:$0xff]
    %v63 = vld [vmem:[#allocation6 + $0x58] sm:$0xff]
    %v64 = vld [vmem:[#allocation6 + $0x60] sm:$0xff]
    %v65 = vld [vmem:[#allocation6 + $0x68] sm:$0xff]
    %v66 = vld [vmem:[#allocation6 + $0x70] sm:$0xff]
    %v67 = vld [vmem:[#allocation6 + $0x78] sm:$0xff]
    %v68 = vld [vmem:[#allocation6 + $0x80] sm:$0xff]
    %v69 = vld [vmem:[#allocation6 + $0x88] sm:$0xff]
    %v70 = vld [vmem:[#allocation6 + $0x90] sm:$0xff]
    %v71 = vld [vmem:[#allocation6 + $0x98] sm:$0xff]
    %v72 = vld [vmem:[#allocation6 + $0xa0] sm:$0xff]
    %v73 = vld [vmem:[#allocation6 + $0xa8] sm:$0xff]
    %v74 = vld [vmem:[#allocation6 + $0xb0] sm:$0xff]
    %v75 = vld [vmem:[#allocation6 + $0xb8] sm:$0xff]
    %v76 = vld [vmem:[#allocation6 + $0xc0] sm:$0xff]
    %v77 = vld [vmem:[#allocation6 + $0xc8] sm:$0xff]
    %v78 = vld [vmem:[#allocation6 + $0xd0] sm:$0xff]
    %v79 = vld [vmem:[#allocation6 + $0xd8] sm:$0xff]
    %v80 = vld [vmem:[#allocation6 + $0xe0] sm:$0xff]
    %v81 = vld [vmem:[#allocation6 + $0xe8] sm:$0xff]
    %v82 = vld [vmem:[#allocation6 + $0xf0] sm:$0xff]
    %v83 = vld [vmem:[#allocation6 + $0xf8] sm:$0xff]
    %v84 = vld [vmem:[#allocation6 + $0x100] sm:$0xff]
    %v85 = vld [vmem:[#allocation6 + $0x108] sm:$0xff]
    %v86 = vld [vmem:[#allocation6 + $0x110] sm:$0xff]
    %v87 = vld [vmem:[#allocation6 + $0x118] sm:$0xff]
    %v88 = vld [vmem:[#allocation6 + $0x120] sm:$0xff]
    %v89 = vld [vmem:[#allocation6 + $0x128] sm:$0xff]
    %v90 = vld [vmem:[#allocation6 + $0x130] sm:$0xff]
    %v91 = vld [vmem:[#allocation6 + $0x138] sm:$0xff]
    %v92 = vld [vmem:[#allocation6 + $0x140] sm:$0xff]
    %v93 = vld [vmem:[#allocation6 + $0x148] sm:$0xff]
    %v94 = vld [vmem:[#allocation6 + $0x150] sm:$0xff]
    %v95 = vld [vmem:[#allocation6 + $0x158] sm:$0xff]
    %v96 = vld [vmem:[#allocation6 + $0x160] sm:$0xff]
    %v97 = vld [vmem:[#allocation6 + $0x168] sm:$0xff]
    %v98 = vld [vmem:[#allocation6 + $0x170] sm:$0xff]
    %v99 = vld [vmem:[#allocation6 + $0x178] sm:$0xff]
    %v100 = vld [vmem:[#allocation6 + $0x180] sm:$0xff]
    %v101 = vld [vmem:[#allocation6 + $0x188] sm:$0xff]
    %v102 = vld [vmem:[#allocation6 + $0x190] sm:$0xff]
    %v103 = vld [vmem:[#allocation6 + $0x198] sm:$0xff]
    %v104 = vld [vmem:[#allocation6 + $0x1a0] sm:$0xff]
    %v105 = vld [vmem:[#allocation6 + $0x1a8] sm:$0xff]
    %v106 = vld [vmem:[#allocation6 + $0x1b0] sm:$0xff]
    %v107 = vld [vmem:[#allocation6 + $0x1b8] sm:$0xff]
    %v108 = vld [vmem:[#allocation6 + $0x1c0] sm:$0xff]
    %v109 = vld [vmem:[#allocation6 + $0x1c8] sm:$0xff]
    %v110 = vld [vmem:[#allocation6 + $0x1d0] sm:$0xff]
    %v111 = vld [vmem:[#allocation6 + $0x1d8] sm:$0xff]
    %v112 = vld [vmem:[#allocation6 + $0x1e0] sm:$0xff]
    %v113 = vld [vmem:[#allocation6 + $0x1e8] sm:$0xff]
    %v114 = vld [vmem:[#allocation6 + $0x1f0] sm:$0xff]
    %v115 = vld [vmem:[#allocation6 + $0x1f8] sm:$0xff]
    %v120 = vunpack.c.l.b16 %v48
    %v121 = vunpack.c.h.b16 %v48
    %v122 = vunpack.c.l.b16 %v49
    %v123 = vunpack.c.h.b16 %v49
    %v124 = vunpack.c.l.b16 %v50
    %v125 = vunpack.c.h.b16 %v50
    %v126 = vunpack.c.l.b16 %v51
    %v127 = vunpack.c.h.b16 %v51
    %v128 = vpack.c.b16 %v120, %v120
    %v129 = vpack.c.b16 %v121, %v121
    %v130 = vpack.c.b16 %v122, %v122
    %v131 = vpack.c.b16 %v123, %v123
    %v132 = vpack.c.b16 %v124, %v124
    %v133 = vpack.c.b16 %v125, %v125
    %v134 = vpack.c.b16 %v126, %v126
    %v135 = vpack.c.b16 %v127, %v127
    %v208 = vunpack.c.l.b16 %v52
    %v209 = vunpack.c.h.b16 %v52
    %v210 = vunpack.c.l.b16 %v53
    %v211 = vunpack.c.h.b16 %v53
    %v212 = vunpack.c.l.b16 %v54
    %v213 = vunpack.c.h.b16 %v54
    %v214 = vunpack.c.l.b16 %v55
    %v215 = vunpack.c.h.b16 %v55
    %v216 = vunpack.c.l.b16 %v56
    %v217 = vunpack.c.h.b16 %v56
    %v218 = vunpack.c.l.b16 %v57
    %v219 = vunpack.c.h.b16 %v57
    %v220 = vunpack.c.l.b16 %v58
    %v221 = vunpack.c.h.b16 %v58
    %v222 = vunpack.c.l.b16 %v59
    %v223 = vunpack.c.h.b16 %v59
    %v224 = vunpack.c.l.b16 %v60
    %v225 = vunpack.c.h.b16 %v60
    %v226 = vunpack.c.l.b16 %v61
    %v227 = vunpack.c.h.b16 %v61
    %v228 = vunpack.c.l.b16 %v62
    %v229 = vunpack.c.h.b16 %v62
    %v230 = vunpack.c.l.b16 %v63
    %v231 = vunpack.c.h.b16 %v63
    %v232 = vunpack.c.l.b16 %v64
    %v233 = vunpack.c.h.b16 %v64
    %v234 = vunpack.c.l.b16 %v65
    %v235 = vunpack.c.h.b16 %v65
    %v236 = vunpack.c.l.b16 %v66
    %v237 = vunpack.c.h.b16 %v66
    %v238 = vunpack.c.l.b16 %v67
    %v239 = vunpack.c.h.b16 %v67
    %v240 = vunpack.c.l.b16 %v68
    %v241 = vunpack.c.h.b16 %v68
    %v242 = vunpack.c.l.b16 %v69
    %v243 = vunpack.c.h.b16 %v69
    %v244 = vunpack.c.l.b16 %v70
    %v245 = vunpack.c.h.b16 %v70
    %v246 = vunpack.c.l.b16 %v71
    %v247 = vunpack.c.h.b16 %v71
    %v248 = vunpack.c.l.b16 %v72
    %v249 = vunpack.c.h.b16 %v72
    %v250 = vunpack.c.l.b16 %v73
    %v251 = vunpack.c.h.b16 %v73
    %v252 = vunpack.c.l.b16 %v74
    %v253 = vunpack.c.h.b16 %v74
    %v254 = vunpack.c.l.b16 %v75
    %v255 = vunpack.c.h.b16 %v75
    %v256 = vunpack.c.l.b16 %v76
    %v257 = vunpack.c.h.b16 %v76
    %v258 = vunpack.c.l.b16 %v77
    %v259 = vunpack.c.h.b16 %v77
    %v260 = vunpack.c.l.b16 %v78
    %v261 = vunpack.c.h.b16 %v78
    %v262 = vunpack.c.l.b16 %v79
    %v263 = vunpack.c.h.b16 %v79
    %v264 = vunpack.c.l.b16 %v80
    %v265 = vunpack.c.h.b16 %v80
    %v266 = vunpack.c.l.b16 %v81
    %v267 = vunpack.c.h.b16 %v81
    %v268 = vunpack.c.l.b16 %v82
    %v269 = vunpack.c.h.b16 %v82
    %v270 = vunpack.c.l.b16 %v83
    %v271 = vunpack.c.h.b16 %v83
    %v272 = vunpack.c.l.b16 %v84
    %v273 = vunpack.c.h.b16 %v84
    %v274 = vunpack.c.l.b16 %v85
    %v275 = vunpack.c.h.b16 %v85
    %v276 = vunpack.c.l.b16 %v86
    %v277 = vunpack.c.h.b16 %v86
    %v278 = vunpack.c.l.b16 %v87
    %v279 = vunpack.c.h.b16 %v87
    %v280 = vunpack.c.l.b16 %v88
    %v281 = vunpack.c.h.b16 %v88
    %v282 = vunpack.c.l.b16 %v89
    %v283 = vunpack.c.h.b16 %v89
    %v284 = vunpack.c.l.b16 %v90
    %v285 = vunpack.c.h.b16 %v90
    %v286 = vunpack.c.l.b16 %v91
    %v287 = vunpack.c.h.b16 %v91
    %v288 = vunpack.c.l.b16 %v92
    %v289 = vunpack.c.h.b16 %v92
    %v290 = vunpack.c.l.b16 %v93
    %v291 = vunpack.c.h.b16 %v93
    %v292 = vunpack.c.l.b16 %v94
    %v293 = vunpack.c.h.b16 %v94
    %v294 = vunpack.c.l.b16 %v95
    %v295 = vunpack.c.h.b16 %v95
    %v296 = vunpack.c.l.b16 %v96
    %v297 = vunpack.c.h.b16 %v96
    %v298 = vunpack.c.l.b16 %v97
    %v299 = vunpack.c.h.b16 %v97
    %v300 = vunpack.c.l.b16 %v98
    %v301 = vunpack.c.h.b16 %v98
    %v302 = vunpack.c.l.b16 %v99
    %v303 = vunpack.c.h.b16 %v99
    %v304 = vunpack.c.l.b16 %v100
    %v305 = vunpack.c.h.b16 %v100
    %v306 = vunpack.c.l.b16 %v101
    %v307 = vunpack.c.h.b16 %v101
    %v308 = vunpack.c.l.b16 %v102
    %v309 = vunpack.c.h.b16 %v102
    %v310 = vunpack.c.l.b16 %v103
    %v311 = vunpack.c.h.b16 %v103
    %v312 = vunpack.c.l.b16 %v104
    %v313 = vunpack.c.h.b16 %v104
    %v314 = vunpack.c.l.b16 %v105
    %v315 = vunpack.c.h.b16 %v105
    %v316 = vunpack.c.l.b16 %v106
    %v317 = vunpack.c.h.b16 %v106
    %v318 = vunpack.c.l.b16 %v107
    %v319 = vunpack.c.h.b16 %v107
    %v320 = vunpack.c.l.b16 %v108
    %v321 = vunpack.c.h.b16 %v108
    %v322 = vunpack.c.l.b16 %v109
    %v323 = vunpack.c.h.b16 %v109
    %v324 = vunpack.c.l.b16 %v110
    %v325 = vunpack.c.h.b16 %v110
    %v326 = vunpack.c.l.b16 %v111
    %v327 = vunpack.c.h.b16 %v111
    %v328 = vunpack.c.l.b16 %v112
    %v329 = vunpack.c.h.b16 %v112
    %v330 = vunpack.c.l.b16 %v113
    %v331 = vunpack.c.h.b16 %v113
    %v332 = vunpack.c.l.b16 %v114
    %v333 = vunpack.c.h.b16 %v114
    %v334 = vunpack.c.l.b16 %v115
    %v335 = vunpack.c.h.b16 %v115
    %v336 = vpack.c.b16 %v216, %v208
    %v337 = vpack.c.b16 %v217, %v209
    %v338 = vpack.c.b16 %v218, %v210
    %v339 = vpack.c.b16 %v219, %v211
    %v340 = vpack.c.b16 %v220, %v212
    %v341 = vpack.c.b16 %v221, %v213
    %v342 = vpack.c.b16 %v222, %v214
    %v343 = vpack.c.b16 %v223, %v215
    %v344 = vpack.c.b16 %v232, %v224
    %v345 = vpack.c.b16 %v233, %v225
    %v346 = vpack.c.b16 %v234, %v226
    %v347 = vpack.c.b16 %v235, %v227
    %v348 = vpack.c.b16 %v236, %v228
    %v349 = vpack.c.b16 %v237, %v229
    %v350 = vpack.c.b16 %v238, %v230
    %v351 = vpack.c.b16 %v239, %v231
    %v352 = vpack.c.b16 %v248, %v240
    %v353 = vpack.c.b16 %v249, %v241
    %v354 = vpack.c.b16 %v250, %v242
    %v355 = vpack.c.b16 %v251, %v243
    %v356 = vpack.c.b16 %v252, %v244
    %v357 = vpack.c.b16 %v253, %v245
    %v358 = vpack.c.b16 %v254, %v246
    %v359 = vpack.c.b16 %v255, %v247
    %v360 = vpack.c.b16 %v264, %v256
    %v361 = vpack.c.b16 %v265, %v257
    %v362 = vpack.c.b16 %v266, %v258
    %v363 = vpack.c.b16 %v267, %v259
    %v364 = vpack.c.b16 %v268, %v260
    %v365 = vpack.c.b16 %v269, %v261
    %v366 = vpack.c.b16 %v270, %v262
    %v367 = vpack.c.b16 %v271, %v263
    %v368 = vpack.c.b16 %v280, %v272
    %v369 = vpack.c.b16 %v281, %v273
    %v370 = vpack.c.b16 %v282, %v274
    %v371 = vpack.c.b16 %v283, %v275
    %v372 = vpack.c.b16 %v284, %v276
    %v373 = vpack.c.b16 %v285, %v277
    %v374 = vpack.c.b16 %v286, %v278
    %v375 = vpack.c.b16 %v287, %v279
    %v376 = vpack.c.b16 %v296, %v288
    %v377 = vpack.c.b16 %v297, %v289
    %v378 = vpack.c.b16 %v298, %v290
    %v379 = vpack.c.b16 %v299, %v291
    %v380 = vpack.c.b16 %v300, %v292
    %v381 = vpack.c.b16 %v301, %v293
    %v382 = vpack.c.b16 %v302, %v294
    %v383 = vpack.c.b16 %v303, %v295
    %v384 = vpack.c.b16 %v312, %v304
    %v385 = vpack.c.b16 %v313, %v305
    %v386 = vpack.c.b16 %v314, %v306
    %v387 = vpack.c.b16 %v315, %v307
    %v388 = vpack.c.b16 %v316, %v308
    %v389 = vpack.c.b16 %v317, %v309
    %v390 = vpack.c.b16 %v318, %v310
    %v391 = vpack.c.b16 %v319, %v311
    %v392 = vpack.c.b16 %v328, %v320
    %v393 = vpack.c.b16 %v329, %v321
    %v394 = vpack.c.b16 %v330, %v322
    %v395 = vpack.c.b16 %v331, %v323
    %v396 = vpack.c.b16 %v332, %v324
    %v397 = vpack.c.b16 %v333, %v325
    %v398 = vpack.c.b16 %v334, %v326
    %v399 = vpack.c.b16 %v335, %v327
    %464 = vmatprep.subr.bf16.mxu0 %v337
    %465 = vmatpush1.bf16.xpose.msra.mxu0 %v336
    %466 = vmatprep.subr.bf16.mxu0 %v345
    %467 = vmatpush1.bf16.xpose.msra.mxu0 %v344
    %468 = vmatprep.subr.bf16.mxu0 %v353
    %469 = vmatpush1.bf16.xpose.msra.mxu0 %v352
    %470 = vmatprep.subr.bf16.mxu0 %v361
    %471 = vmatpush1.bf16.xpose.msra.mxu0 %v360
    %472 = vmatprep.subr.bf16.mxu0 %v369
    %473 = vmatpush1.bf16.xpose.msra.mxu0 %v368
    %474 = vmatprep.subr.bf16.mxu0 %v377
    %475 = vmatpush1.bf16.xpose.msra.mxu0 %v376
    %476 = vmatprep.subr.bf16.mxu0 %v385
    %477 = vmatpush1.bf16.xpose.msra.mxu0 %v384
    %478 = vmatprep.subr.bf16.mxu0 %v393
    %479 = vmatpush1.bf16.xpose.msra.mxu0 %v392
    %480 = vmatprep.subr.bf16.mxu0 0
    %481 = vmatpush1.bf16.xpose.msra.mxu0 0
    %482 = vmatprep.subr.bf16.mxu0 0
    %483 = vmatpush1.bf16.xpose.msra.mxu0 0
    %484 = vmatprep.subr.bf16.mxu0 0
    %485 = vmatpush1.bf16.xpose.msra.mxu0 0
    %486 = vmatprep.subr.bf16.mxu0 0
    %487 = vmatpush1.bf16.xpose.msra.mxu0 0
    %488 = vmatprep.subr.bf16.mxu0 0
    %489 = vmatpush1.bf16.xpose.msra.mxu0 0
    %490 = vmatprep.subr.bf16.mxu0 0
    %491 = vmatpush1.bf16.xpose.msra.mxu0 0
    %492 = vmatprep.subr.bf16.mxu0 0
    %493 = vmatpush1.bf16.xpose.msra.mxu0 0
    %494 = vmatprep.subr.bf16.mxu0 0
    %495 = vmatpush1.bf16.xpose.msra.mxu0 0
    %496 = vmatprep.mubr.bf16.mxu0 %v129
    %497 = vmatmul.mubr.bf16.gmra.mrb[0].mxu0 %v128
    %v498 = vpop.f32.mrb[0].mxu0
    %v499 = vadd.f32 0.0, %v498
    %v500 = vpop.f32.mrb[0].mxu0
    %v501 = vpop.f32.mrb[0].mxu0
    %v502 = vpop.f32.mrb[0].mxu0
    %503 = vdwg.mxu0
    %504 = vmatprep.subr.bf16.mxu0 %v339
    %505 = vmatpush1.bf16.xpose.msra.mxu0 %v338
    %506 = vmatprep.subr.bf16.mxu0 %v347
    %507 = vmatpush1.bf16.xpose.msra.mxu0 %v346
    %508 = vmatprep.subr.bf16.mxu0 %v355
    %509 = vmatpush1.bf16.xpose.msra.mxu0 %v354
    %510 = vmatprep.subr.bf16.mxu0 %v363
    %511 = vmatpush1.bf16.xpose.msra.mxu0 %v362
    %512 = vmatprep.subr.bf16.mxu0 %v371
    %513 = vmatpush1.bf16.xpose.msra.mxu0 %v370
    %514 = vmatprep.subr.bf16.mxu0 %v379
    %515 = vmatpush1.bf16.xpose.msra.mxu0 %v378
    %516 = vmatprep.subr.bf16.mxu0 %v387
    %517 = vmatpush1.bf16.xpose.msra.mxu0 %v386
    %518 = vmatprep.subr.bf16.mxu0 %v395
    %519 = vmatpush1.bf16.xpose.msra.mxu0 %v394
    %520 = vmatprep.subr.bf16.mxu0 0
    %521 = vmatpush1.bf16.xpose.msra.mxu0 0
    %522 = vmatprep.subr.bf16.mxu0 0
    %523 = vmatpush1.bf16.xpose.msra.mxu0 0
    %524 = vmatprep.subr.bf16.mxu0 0
    %525 = vmatpush1.bf16.xpose.msra.mxu0 0
    %526 = vmatprep.subr.bf16.mxu0 0
    %527 = vmatpush1.bf16.xpose.msra.mxu0 0
    %528 = vmatprep.subr.bf16.mxu0 0
    %529 = vmatpush1.bf16.xpose.msra.mxu0 0
    %530 = vmatprep.subr.bf16.mxu0 0
    %531 = vmatpush1.bf16.xpose.msra.mxu0 0
    %532 = vmatprep.subr.bf16.mxu0 0
    %533 = vmatpush1.bf16.xpose.msra.mxu0 0
    %534 = vmatprep.subr.bf16.mxu0 0
    %535 = vmatpush1.bf16.xpose.msra.mxu0 0
    %536 = vmatprep.mubr.bf16.mxu0 %v131
    %537 = vmatmul.mubr.bf16.gmra.mrb[0].mxu0 %v130
    %v538 = vpop.f32.mrb[0].mxu0
    %v539 = vadd.f32 %v499, %v538
    %v540 = vpop.f32.mrb[0].mxu0
    %v541 = vpop.f32.mrb[0].mxu0
    %v542 = vpop.f32.mrb[0].mxu0
    %543 = vdwg.mxu0
    %544 = vmatprep.subr.bf16.mxu0 %v341
    %545 = vmatpush1.bf16.xpose.msra.mxu0 %v340
    %546 = vmatprep.subr.bf16.mxu0 %v349
    %547 = vmatpush1.bf16.xpose.msra.mxu0 %v348
    %548 = vmatprep.subr.bf16.mxu0 %v357
    %549 = vmatpush1.bf16.xpose.msra.mxu0 %v356
    %550 = vmatprep.subr.bf16.mxu0 %v365
    %551 = vmatpush1.bf16.xpose.msra.mxu0 %v364
    %552 = vmatprep.subr.bf16.mxu0 %v373
    %553 = vmatpush1.bf16.xpose.msra.mxu0 %v372
    %554 = vmatprep.subr.bf16.mxu0 %v381
    %555 = vmatpush1.bf16.xpose.msra.mxu0 %v380
    %556 = vmatprep.subr.bf16.mxu0 %v389
    %557 = vmatpush1.bf16.xpose.msra.mxu0 %v388
    %558 = vmatprep.subr.bf16.mxu0 %v397
    %559 = vmatpush1.bf16.xpose.msra.mxu0 %v396
    %560 = vmatprep.subr.bf16.mxu0 0
    %561 = vmatpush1.bf16.xpose.msra.mxu0 0
    %562 = vmatprep.subr.bf16.mxu0 0
    %563 = vmatpush1.bf16.xpose.msra.mxu0 0
    %564 = vmatprep.subr.bf16.mxu0 0
    %565 = vmatpush1.bf16.xpose.msra.mxu0 0
    %566 = vmatprep.subr.bf16.mxu0 0
    %567 = vmatpush1.bf16.xpose.msra.mxu0 0
    %568 = vmatprep.subr.bf16.mxu0 0
    %569 = vmatpush1.bf16.xpose.msra.mxu0 0
    %570 = vmatprep.subr.bf16.mxu0 0
    %571 = vmatpush1.bf16.xpose.msra.mxu0 0
    %572 = vmatprep.subr.bf16.mxu0 0
    %573 = vmatpush1.bf16.xpose.msra.mxu0 0
    %574 = vmatprep.subr.bf16.mxu0 0
    %575 = vmatpush1.bf16.xpose.msra.mxu0 0
    %576 = vmatprep.mubr.bf16.mxu0 %v133
    %577 = vmatmul.mubr.bf16.gmra.mrb[0].mxu0 %v132
    %v578 = vpop.f32.mrb[0].mxu0
    %v579 = vadd.f32 %v539, %v578
    %v580 = vpop.f32.mrb[0].mxu0
    %v581 = vpop.f32.mrb[0].mxu0
    %v582 = vpop.f32.mrb[0].mxu0
    %583 = vdwg.mxu0
    %584 = vmatprep.subr.bf16.mxu0 %v343
    %585 = vmatpush1.bf16.xpose.msra.mxu0 %v342
    %586 = vmatprep.subr.bf16.mxu0 %v351
    %587 = vmatpush1.bf16.xpose.msra.mxu0 %v350
    %588 = vmatprep.subr.bf16.mxu0 %v359
    %589 = vmatpush1.bf16.xpose.msra.mxu0 %v358
    %590 = vmatprep.subr.bf16.mxu0 %v367
    %591 = vmatpush1.bf16.xpose.msra.mxu0 %v366
    %592 = vmatprep.subr.bf16.mxu0 %v375
    %593 = vmatpush1.bf16.xpose.msra.mxu0 %v374
    %594 = vmatprep.subr.bf16.mxu0 %v383
    %595 = vmatpush1.bf16.xpose.msra.mxu0 %v382
    %596 = vmatprep.subr.bf16.mxu0 %v391
    %597 = vmatpush1.bf16.xpose.msra.mxu0 %v390
    %598 = vmatprep.subr.bf16.mxu0 %v399
    %599 = vmatpush1.bf16.xpose.msra.mxu0 %v398
    %600 = vmatprep.subr.bf16.mxu0 0
    %601 = vmatpush1.bf16.xpose.msra.mxu0 0
    %602 = vmatprep.subr.bf16.mxu0 0
    %603 = vmatpush1.bf16.xpose.msra.mxu0 0
    %604 = vmatprep.subr.bf16.mxu0 0
    %605 = vmatpush1.bf16.xpose.msra.mxu0 0
    %606 = vmatprep.subr.bf16.mxu0 0
    %607 = vmatpush1.bf16.xpose.msra.mxu0 0
    %608 = vmatprep.subr.bf16.mxu0 0
    %609 = vmatpush1.bf16.xpose.msra.mxu0 0
    %610 = vmatprep.subr.bf16.mxu0 0
    %611 = vmatpush1.bf16.xpose.msra.mxu0 0
    %612 = vmatprep.subr.bf16.mxu0 0
    %613 = vmatpush1.bf16.xpose.msra.mxu0 0
    %614 = vmatprep.subr.bf16.mxu0 0
    %615 = vmatpush1.bf16.xpose.msra.mxu0 0
    %616 = vmatprep.mubr.bf16.mxu0 %v135
    %617 = vmatmul.mubr.bf16.gmra.mrb[0].mxu0 %v134
    %v618 = vpop.f32.mrb[0].mxu0
    %v619 = vadd.f32 %v579, %v618
    %v620 = vpop.f32.mrb[0].mxu0
    %v621 = vpop.f32.mrb[0].mxu0
    %v622 = vpop.f32.mrb[0].mxu0
    %623 = vdwg.mxu0
    %v624 = vadd.f32 %v47, %v619
    %625 = vst [vmem:[#allocation2] sm:$0xff] %v624
    // Predicated region
    $region26: #{tpu_custom_call.1} parent=1 // pred_check
      %p626 = pneg %p42
    $region27: #{tpu_custom_call.1} parent=1 // pred_check_branch
      %628 = sbr.rel (%p626) target = $region29
    $region28: #{tpu_custom_call.1} parent=1 // pred_region
      %v629 = vld [vmem:[#allocation2] sm:$0xff]
      %v630 = vld [vmem:[%s2] sm:$0x1]
      %v632 = vlaneseq
      %v633 = vshrl.u32 %v632, 7
      %v634 = vsub.s32 0, %v633
      %v635 = vrot.slane %v630, %v634
      %v637 = vadd.f32 %v629, %v635
      %638 = vst [vmem:[#allocation8] sm:$0xff] %v637
    $region29: #{tpu_custom_call.1} parent=1 // pred_fallthru
      _
    // Predicated region
    $region30: #{tpu_custom_call.1} parent=1 // pred_check
      _
    $region31: #{tpu_custom_call.1} parent=1 // pred_check_branch
      %640 = sbr.rel (0) target = $region33
    $region32: #{tpu_custom_call.1} parent=1 // pred_region
      %s642 = ssub.s32 128, 128
      %643 = vsyncadd [#allocation5], %s642
      %s645 = sshll.u32 [#allocation8], 4
      %s646 = int_to_ptr.vmem [resolvable:$true] %s645
      %648 = dma.vmem_to_hbm [thread:$0]  %s646, 128, %s3, [#allocation5]
    $region33: #{tpu_custom_call.1} parent=1 // pred_fallthru
      _
    // Predicated region
    $region34: #{tpu_custom_call.1} parent=1 // pred_check
      _
    $region35: #{tpu_custom_call.1} parent=1 // pred_check_branch
      %650 = sbr.rel (0) target = $region37
    $region36: #{tpu_custom_call.1} parent=1 // pred_region
      %651 = dma.done [#allocation5], 128
    $region37: #{tpu_custom_call.1} parent=1 // pred_fallthru
      _
    %652 = vsyncpa [#allocation4], 1
    %653 = vsyncpa [#allocation7], 1
    %654 = vsyncpa [#allocation5], 1

</llo_original>
